<compile_context>
chip_gen: v7x
topology: tpu7x:2x2x1
jax: 0.10.0
libtpu: 0.0.40
codegen_flags: <defaults>
</compile_context>

<pallas_src>
import jax
import jax.numpy as jnp
from jax.experimental import pallas as pl
from jax.experimental.pallas import tpu as pltpu

HIDDEN = 32  # fixed by the module definition


def attention_layer_kernel(x_ref,
                           w1_ref, b1_ref,
                           w2_ref, b2_ref,
                           w3_ref, b3_ref,
                           w4_ref, b4_ref,
                           wd_ref, bd_ref,
                           out_ref):
    # x tile arrives in natural (tile_b, D) layout (no extra HBM transpose
    # pass).  Upcast to f32 first (v5e VPU/EUP have no bf16), then put batch on
    # the lane axis with one small transpose (XLU, hidden under MXU work).
    x_nat = x_ref[...].astype(jnp.float32)              # (tile_b, D)
    x = x_nat.T                                         # (D, tile_b)

    # attention MLP: Linear -> ReLU (x3) -> Linear -> Sigmoid, transposed
    # orientation  h[out, batch] = W[out, in] @ x[in, batch] + b[out, 1]
    h = jnp.dot(w1_ref[...], x, preferred_element_type=jnp.float32) + b1_ref[...]
    h = jnp.maximum(h, 0.0)
    h = jnp.dot(w2_ref[...], h, preferred_element_type=jnp.float32) + b2_ref[...]
    h = jnp.maximum(h, 0.0)
    h = jnp.dot(w3_ref[...], h, preferred_element_type=jnp.float32) + b3_ref[...]
    h = jnp.maximum(h, 0.0)
    logits = jnp.dot(w4_ref[...], h, preferred_element_type=jnp.float32) + b4_ref[...]
    attn = jax.nn.sigmoid(logits)                       # (D, tile_b)

    # gate the input and decode: VPU multiply + sublane reduce (no N=1 matmul),
    # producing a lane-dense (1, tile_b) row for an unmasked store.
    weighted = attn * x                                  # (D, tile_b)
    out = jnp.sum(weighted * wd_ref[...], axis=0, keepdims=True) + bd_ref[...]
    out_ref[...] = out.astype(out_ref.dtype)


def _vmem_budget_bytes():
    """Per-generation VMEM budget (v7x has only 64 MiB physical / 32 scoped)."""
    try:
        cap = int(pltpu.get_tpu_info().vmem_capacity_bytes)
    except Exception:
        cap = 64 << 20                                   # conservative (v7x)
    return min(cap // 2, 64 << 20)


def _choose_tile_b(b_padded, d, stream_itemsize, vmem_budget):
    """Lane-aligned batch tile: as wide as VMEM allows (<= 4096 lanes), but
    preferring >= 4 grid steps so v7x's two TensorCores each keep >= 2 steps
    of double-buffered pipelining."""
    def footprint(tb):
        act = (4 * HIDDEN + 4 * d) * 4 * tb              # live f32 activation slabs
        xin = 2 * tb * d * stream_itemsize               # double-buffered x tile
        out = 2 * tb * 4                                 # double-buffered out row
        return act + xin + out + (2 << 20)               # params / scratch slack

    best_key, best_tb = None, min(128, b_padded)
    tb = 128
    while tb <= min(4096, b_padded):
        if b_padded % tb == 0 and footprint(tb) <= vmem_budget:
            steps = b_padded // tb
            key = (min(steps, 4), tb)                    # >=4 steps first, then width
            if best_key is None or key > best_key:
                best_key, best_tb = key, tb
        tb += 128
    return best_tb


def attention_layer(x, params, *, tile_b=None):
    """x: [B, D] (f32 or bf16 — bf16 recommended on v6e/v7x).
    params: PyTorch nn.Linear layout weights (out, in) and biases (out,).
    Returns [B, 1] float32, matching AttentionLayer.forward."""
    B, D = x.shape

    # Ragged batch: pad up to a lane-aligned multiple of 128 (keeps pipelining
    # and avoids a single giant block that could blow v7x's 64 MiB VMEM).
    b_pad = ((B + 127) // 128) * 128
    if b_pad != B:
        x = jnp.pad(x, ((0, b_pad - B), (0, 0)))

    vmem_budget = _vmem_budget_bytes()
    if tile_b is None:
        tile_b = _choose_tile_b(b_pad, D, x.dtype.itemsize, vmem_budget)
    assert b_pad % tile_b == 0 and tile_b % 128 == 0

    # layout plumbing (weights are tiny; keep f32, column biases).
    w1, b1 = params["w1"], params["b1"].reshape(-1, 1)   # (32, D), (32, 1)
    w2, b2 = params["w2"], params["b2"].reshape(-1, 1)   # (32, 32), (32, 1)
    w3, b3 = params["w3"], params["b3"].reshape(-1, 1)   # (32, 32), (32, 1)
    w4, b4 = params["w4"], params["b4"].reshape(-1, 1)   # (D, 32), (D, 1)
    wd = params["wd"].T                                  # (D, 1) decoder column
    bd = params["bd"].reshape(1, 1)                      # (1, 1)
    param_arrays = (w1, b1, w2, b2, w3, b3, w4, b4, wd, bd)

    def const_spec(arr):
        # whole parameter block, identical for every grid step (no re-DMA)
        return pl.BlockSpec(arr.shape, lambda i: (0, 0))

    n_param_elems = sum(int(a.size) for a in param_arrays)
    cost = pl.CostEstimate(
        flops=2 * b_pad * (HIDDEN * D + HIDDEN * HIDDEN + HIDDEN * HIDDEN
                           + D * HIDDEN + 2 * D),
        transcendentals=b_pad * D,                        # sigmoid
        bytes_accessed=b_pad * D * x.dtype.itemsize + b_pad * 4 + n_param_elems * 4,
    )

    grid = (b_pad // tile_b,)
    out_row = pl.pallas_call(
        attention_layer_kernel,
        out_shape=jax.ShapeDtypeStruct((1, b_pad), jnp.float32),
        grid=grid,
        in_specs=[pl.BlockSpec((tile_b, D), lambda i: (i, 0))]   # natural x blocks
                 + [const_spec(a) for a in param_arrays],
        out_specs=pl.BlockSpec((1, tile_b), lambda i: (0, i)),   # lane-dense out
        compiler_params=pltpu.CompilerParams(
            dimension_semantics=("parallel",),
            vmem_limit_bytes=vmem_budget),
        cost_estimate=cost,
    )(x, *param_arrays)

    # (1, b_pad) -> (b_pad, 1) is a pure reshape (no data movement), then crop.
    return out_row.reshape(b_pad, 1)[:B]


def init_params(key, input_dim):
    """Deterministic synthetic parameters, PyTorch nn.Linear layout (out, in) / (out,)."""
    ks = jax.random.split(key, 10)

    def linear(kw, kb, fan_in, fan_out):
        bound = 1.0 / jnp.sqrt(fan_in)
        w = jax.random.uniform(kw, (fan_out, fan_in), jnp.float32, -bound, bound)
        b = jax.random.uniform(kb, (fan_out,), jnp.float32, -bound, bound)
        return w, b

    w1, b1 = linear(ks[0], ks[1], input_dim, HIDDEN)
    w2, b2 = linear(ks[2], ks[3], HIDDEN, HIDDEN)
    w3, b3 = linear(ks[4], ks[5], HIDDEN, HIDDEN)
    w4, b4 = linear(ks[6], ks[7], HIDDEN, input_dim)
    wd, bd = linear(ks[8], ks[9], input_dim, 1)
    return dict(w1=w1, b1=b1, w2=w2, b2=b2, w3=w3, b3=b3,
                w4=w4, b4=b4, wd=wd, bd=bd)


def reference(x, p):
    """Pure-JAX mirror of AttentionLayer.forward (PyTorch weight layout)."""
    h = jnp.maximum(x @ p["w1"].T + p["b1"], 0.0)
    h = jnp.maximum(h @ p["w2"].T + p["b2"], 0.0)
    h = jnp.maximum(h @ p["w3"].T + p["b3"], 0.0)
    attn = jax.nn.sigmoid(h @ p["w4"].T + p["b4"])
    return (attn * x) @ p["wd"].T + p["bd"]


if __name__ == "__main__":
    key = jax.random.PRNGKey(0)
    k_x, k_p = jax.random.split(key)

    batch, input_dim = 512, 16     # 4 lane-dense grid steps at tile_b=128
    x = jax.random.normal(k_x, (batch, input_dim), jnp.float32)
    params = init_params(k_p, input_dim)

    # 1) f32-streamed x, tight check against the pure-JAX reference.
    out = jax.block_until_ready(attention_layer(x, params))
    ref = reference(x, params)
    assert out.shape == (batch, 1)
    assert jnp.allclose(out, ref, atol=1e-5, rtol=1e-5)

    # 2) bf16-streamed x (halves the dominant HBM stream on v6e/v7x).  The
    #    reference consumes the same bf16-quantized input; tolerance covers the
    #    MXU's bf16 multiply path vs the kernel's f32 VPU decode.
    x16 = x.astype(jnp.bfloat16)
    out16 = jax.block_until_ready(attention_layer(x16, params))
    ref16 = reference(x16.astype(jnp.float32), params)
    assert out16.shape == (batch, 1)
    assert jnp.allclose(out16, ref16, atol=1e-2, rtol=1e-2)

    # 3) ragged batch exercises the pad-to-128 path (no single-block fallback).
    xr = x[:200]
    outr = jax.block_until_ready(attention_layer(xr, params))
    refr = reference(xr, params)
    assert outr.shape == (200, 1)
    assert jnp.allclose(outr, refr, atol=1e-5, rtol=1e-5)

    print("KERNEL_OK")
</pallas_src>

<mosaic_0001>
module attributes {stable_mosaic.version = 11 : i64} {
  func.func @attention_layer_kernel(%arg0: i32, %arg1: memref<128x16xf32, #tpu.memory_space<vmem>>, %arg2: memref<32x16xf32, #tpu.memory_space<vmem>>, %arg3: memref<32x1xf32, #tpu.memory_space<vmem>>, %arg4: memref<32x32xf32, #tpu.memory_space<vmem>>, %arg5: memref<32x1xf32, #tpu.memory_space<vmem>>, %arg6: memref<32x32xf32, #tpu.memory_space<vmem>>, %arg7: memref<32x1xf32, #tpu.memory_space<vmem>>, %arg8: memref<16x32xf32, #tpu.memory_space<vmem>>, %arg9: memref<16x1xf32, #tpu.memory_space<vmem>>, %arg10: memref<16x1xf32, #tpu.memory_space<vmem>>, %arg11: memref<1x1xf32, #tpu.memory_space<vmem>>, %arg12: memref<1x128xf32, #tpu.memory_space<vmem>>) attributes {dimension_semantics = [#tpu.dimension_semantics<parallel>], iteration_bounds = array<i64: 4>, scalar_prefetch = 0 : i64, scratch_operands = 0 : i64, tpu.core_type = #tpu.core_type<tc>, window_params = [{transform_indices = @transform_0, window_bounds = array<i64: 128, 16>}, {pipeline_mode = #tpu.pipeline_mode<synchronous>, transform_indices = @transform_1, window_bounds = array<i64: 32, 16>}, {pipeline_mode = #tpu.pipeline_mode<synchronous>, transform_indices = @transform_2, window_bounds = array<i64: 32, 1>}, {pipeline_mode = #tpu.pipeline_mode<synchronous>, transform_indices = @transform_3, window_bounds = array<i64: 32, 32>}, {pipeline_mode = #tpu.pipeline_mode<synchronous>, transform_indices = @transform_4, window_bounds = array<i64: 32, 1>}, {pipeline_mode = #tpu.pipeline_mode<synchronous>, transform_indices = @transform_5, window_bounds = array<i64: 32, 32>}, {pipeline_mode = #tpu.pipeline_mode<synchronous>, transform_indices = @transform_6, window_bounds = array<i64: 32, 1>}, {pipeline_mode = #tpu.pipeline_mode<synchronous>, transform_indices = @transform_7, window_bounds = array<i64: 16, 32>}, {pipeline_mode = #tpu.pipeline_mode<synchronous>, transform_indices = @transform_8, window_bounds = array<i64: 16, 1>}, {pipeline_mode = #tpu.pipeline_mode<synchronous>, transform_indices = @transform_9, window_bounds = array<i64: 16, 1>}, {pipeline_mode = #tpu.pipeline_mode<synchronous>, transform_indices = @transform_10, window_bounds = array<i64: 1, 1>}, {transform_indices = @transform_11, window_bounds = array<i64: 1, 128>}]} {
    %c0 = arith.constant 0 : index
    %c0_0 = arith.constant 0 : index
    %0 = vector.load %arg1[%c0, %c0_0] : memref<128x16xf32, #tpu.memory_space<vmem>>, vector<128x16xf32>
    %1 = tpu.transpose %0, [1, 0] : vector<128x16xf32> -> vector<16x128xf32>
    %c0_1 = arith.constant 0 : index
    %c0_2 = arith.constant 0 : index
    %2 = vector.load %arg2[%c0_1, %c0_2] : memref<32x16xf32, #tpu.memory_space<vmem>>, vector<32x16xf32>
    %cst = arith.constant dense<0.000000e+00> : vector<32x128xf32>
    %3 = tpu.matmul %2, %1, %cst {dimension_numbers = #tpu.dot_dimension_numbers<[1], [0], [0], [1], [0, 0, 1, 1], [], []>} : vector<32x16xf32>, vector<16x128xf32>, vector<32x128xf32> -> vector<32x128xf32>
    %c0_3 = arith.constant 0 : index
    %c0_4 = arith.constant 0 : index
    %4 = vector.load %arg3[%c0_3, %c0_4] : memref<32x1xf32, #tpu.memory_space<vmem>>, vector<32x1xf32>
    %5 = vector.broadcast %4 : vector<32x1xf32> to vector<32x128xf32>
    %6 = arith.addf %3, %5 : vector<32x128xf32>
    %cst_5 = arith.constant 0.000000e+00 : f32
    %7 = vector.broadcast %cst_5 : f32 to vector<32x128xf32>
    %8 = arith.maximumf %6, %7 : vector<32x128xf32>
    %c0_6 = arith.constant 0 : index
    %c0_7 = arith.constant 0 : index
    %9 = vector.load %arg4[%c0_6, %c0_7] : memref<32x32xf32, #tpu.memory_space<vmem>>, vector<32x32xf32>
    %cst_8 = arith.constant dense<0.000000e+00> : vector<32x128xf32>
    %10 = tpu.matmul %9, %8, %cst_8 {dimension_numbers = #tpu.dot_dimension_numbers<[1], [0], [0], [1], [0, 0, 1, 1], [], []>} : vector<32x32xf32>, vector<32x128xf32>, vector<32x128xf32> -> vector<32x128xf32>
    %c0_9 = arith.constant 0 : index
    %c0_10 = arith.constant 0 : index
    %11 = vector.load %arg5[%c0_9, %c0_10] : memref<32x1xf32, #tpu.memory_space<vmem>>, vector<32x1xf32>
    %12 = vector.broadcast %11 : vector<32x1xf32> to vector<32x128xf32>
    %13 = arith.addf %10, %12 : vector<32x128xf32>
    %cst_11 = arith.constant 0.000000e+00 : f32
    %14 = vector.broadcast %cst_11 : f32 to vector<32x128xf32>
    %15 = arith.maximumf %13, %14 : vector<32x128xf32>
    %c0_12 = arith.constant 0 : index
    %c0_13 = arith.constant 0 : index
    %16 = vector.load %arg6[%c0_12, %c0_13] : memref<32x32xf32, #tpu.memory_space<vmem>>, vector<32x32xf32>
    %cst_14 = arith.constant dense<0.000000e+00> : vector<32x128xf32>
    %17 = tpu.matmul %16, %15, %cst_14 {dimension_numbers = #tpu.dot_dimension_numbers<[1], [0], [0], [1], [0, 0, 1, 1], [], []>} : vector<32x32xf32>, vector<32x128xf32>, vector<32x128xf32> -> vector<32x128xf32>
    %c0_15 = arith.constant 0 : index
    %c0_16 = arith.constant 0 : index
    %18 = vector.load %arg7[%c0_15, %c0_16] : memref<32x1xf32, #tpu.memory_space<vmem>>, vector<32x1xf32>
    %19 = vector.broadcast %18 : vector<32x1xf32> to vector<32x128xf32>
    %20 = arith.addf %17, %19 : vector<32x128xf32>
    %cst_17 = arith.constant 0.000000e+00 : f32
    %21 = vector.broadcast %cst_17 : f32 to vector<32x128xf32>
    %22 = arith.maximumf %20, %21 : vector<32x128xf32>
    %c0_18 = arith.constant 0 : index
    %c0_19 = arith.constant 0 : index
    %23 = vector.load %arg8[%c0_18, %c0_19] : memref<16x32xf32, #tpu.memory_space<vmem>>, vector<16x32xf32>
    %cst_20 = arith.constant dense<0.000000e+00> : vector<16x128xf32>
    %24 = tpu.matmul %23, %22, %cst_20 {dimension_numbers = #tpu.dot_dimension_numbers<[1], [0], [0], [1], [0, 0, 1, 1], [], []>} : vector<16x32xf32>, vector<32x128xf32>, vector<16x128xf32> -> vector<16x128xf32>
    %c0_21 = arith.constant 0 : index
    %c0_22 = arith.constant 0 : index
    %25 = vector.load %arg9[%c0_21, %c0_22] : memref<16x1xf32, #tpu.memory_space<vmem>>, vector<16x1xf32>
    %26 = vector.broadcast %25 : vector<16x1xf32> to vector<16x128xf32>
    %27 = arith.addf %24, %26 : vector<16x128xf32>
    %28 = arith.negf %27 : vector<16x128xf32>
    %29 = math.exp %28 : vector<16x128xf32>
    %cst_23 = arith.constant 1.000000e+00 : f32
    %30 = vector.broadcast %cst_23 : f32 to vector<16x128xf32>
    %31 = arith.addf %30, %29 : vector<16x128xf32>
    %32 = arith.divf %30, %31 : vector<16x128xf32>
    %33 = arith.mulf %32, %1 : vector<16x128xf32>
    %c0_24 = arith.constant 0 : index
    %c0_25 = arith.constant 0 : index
    %34 = vector.load %arg10[%c0_24, %c0_25] : memref<16x1xf32, #tpu.memory_space<vmem>>, vector<16x1xf32>
    %35 = vector.broadcast %34 : vector<16x1xf32> to vector<16x128xf32>
    %36 = arith.mulf %33, %35 : vector<16x128xf32>
    %cst_26 = arith.constant dense<0.000000e+00> : vector<128xf32>
    %37 = vector.multi_reduction <add>, %36, %cst_26 [0] : vector<16x128xf32> to vector<128xf32>
    %38 = vector.shape_cast %37 : vector<128xf32> to vector<1x128xf32>
    %c0_27 = arith.constant 0 : index
    %c0_28 = arith.constant 0 : index
    %39 = vector.load %arg11[%c0_27, %c0_28] : memref<1x1xf32, #tpu.memory_space<vmem>>, vector<1x1xf32>
    %40 = vector.broadcast %39 : vector<1x1xf32> to vector<1x128xf32>
    %41 = arith.addf %38, %40 : vector<1x128xf32>
    %c0_29 = arith.constant 0 : index
    %c0_30 = arith.constant 0 : index
    %42 = vector.load %arg12[%c0_29, %c0_30] : memref<1x128xf32, #tpu.memory_space<vmem>>, vector<1x128xf32>
    tpu.vector_store %arg12[%c0_29, %c0_30], %41 {strides = array<i32>} : memref<1x128xf32, #tpu.memory_space<vmem>>, vector<1x128xf32>,
    return
  }
  func.func @transform_0(%arg0: i32) -> (i32, i32) {
    %c0_i32 = arith.constant 0 : i32
    %c0_i32_0 = arith.constant 0 : i32
    return %arg0, %c0_i32 : i32, i32
  }
  func.func @transform_1(%arg0: i32) -> (i32, i32) {
    %c0_i32 = arith.constant 0 : i32
    %c0_i32_0 = arith.constant 0 : i32
    %c0_i32_1 = arith.constant 0 : i32
    return %c0_i32, %c0_i32_0 : i32, i32
  }
  func.func @transform_2(%arg0: i32) -> (i32, i32) {
    %c0_i32 = arith.constant 0 : i32
    %c0_i32_0 = arith.constant 0 : i32
    %c0_i32_1 = arith.constant 0 : i32
    return %c0_i32, %c0_i32_0 : i32, i32
  }
  func.func @transform_3(%arg0: i32) -> (i32, i32) {
    %c0_i32 = arith.constant 0 : i32
    %c0_i32_0 = arith.constant 0 : i32
    %c0_i32_1 = arith.constant 0 : i32
    return %c0_i32, %c0_i32_0 : i32, i32
  }
  func.func @transform_4(%arg0: i32) -> (i32, i32) {
    %c0_i32 = arith.constant 0 : i32
    %c0_i32_0 = arith.constant 0 : i32
    %c0_i32_1 = arith.constant 0 : i32
    return %c0_i32, %c0_i32_0 : i32, i32
  }
  func.func @transform_5(%arg0: i32) -> (i32, i32) {
    %c0_i32 = arith.constant 0 : i32
    %c0_i32_0 = arith.constant 0 : i32
    %c0_i32_1 = arith.constant 0 : i32
    return %c0_i32, %c0_i32_0 : i32, i32
  }
  func.func @transform_6(%arg0: i32) -> (i32, i32) {
    %c0_i32 = arith.constant 0 : i32
    %c0_i32_0 = arith.constant 0 : i32
    %c0_i32_1 = arith.constant 0 : i32
    return %c0_i32, %c0_i32_0 : i32, i32
  }
  func.func @transform_7(%arg0: i32) -> (i32, i32) {
    %c0_i32 = arith.constant 0 : i32
    %c0_i32_0 = arith.constant 0 : i32
    %c0_i32_1 = arith.constant 0 : i32
    return %c0_i32, %c0_i32_0 : i32, i32
  }
  func.func @transform_8(%arg0: i32) -> (i32, i32) {
    %c0_i32 = arith.constant 0 : i32
    %c0_i32_0 = arith.constant 0 : i32
    %c0_i32_1 = arith.constant 0 : i32
    return %c0_i32, %c0_i32_0 : i32, i32
  }
  func.func @transform_9(%arg0: i32) -> (i32, i32) {
    %c0_i32 = arith.constant 0 : i32
    %c0_i32_0 = arith.constant 0 : i32
    %c0_i32_1 = arith.constant 0 : i32
    return %c0_i32, %c0_i32_0 : i32, i32
  }
  func.func @transform_10(%arg0: i32) -> (i32, i32) {
    %c0_i32 = arith.constant 0 : i32
    %c0_i32_0 = arith.constant 0 : i32
    %c0_i32_1 = arith.constant 0 : i32
    return %c0_i32, %c0_i32_0 : i32, i32
  }
  func.func @transform_11(%arg0: i32) -> (i32, i32) {
    %c0_i32 = arith.constant 0 : i32
    %c0_i32_0 = arith.constant 0 : i32
    return %c0_i32, %arg0 : i32, i32
  }
}

</mosaic_0001>

<llo_original>
// kernel: tpu_custom_call.1
$region0: #{tpu_custom_call.1}
  #allocation0 [shape = 'u32[]', space=smem, size = 0x4, offset = 0x4, fixed_abs, tag = 'smem constant byte address 0x4 - core index']
  #allocation1 [shape = 'u32[144,128]{1,0:T(1,128)}', space=vmem, size = 0x12000, scoped, tag = 'internal scratch']
  #allocation2 [shape = 'f32[1,1]{1,0:T(1,128)S(1)}', space=vmem, size = 0x200, scoped, tag = 'scoped memory for tpu_custom_call.1']
  %s0 = inlined_call_operand.vmem [shape: f32[512,16], index: 0, kind: input, shape index: {}]
  %s1 = inlined_call_operand.vmem [shape: f32[32,16], index: 1, kind: input, shape index: {}]
  %s2 = inlined_call_operand.vmem [shape: f32[32,1], index: 2, kind: input, shape index: {}]
  %s3 = inlined_call_operand.vmem [shape: f32[32,32], index: 3, kind: input, shape index: {}]
  %s4 = inlined_call_operand.vmem [shape: f32[32,1], index: 4, kind: input, shape index: {}]
  %s5 = inlined_call_operand.vmem [shape: f32[32,32], index: 5, kind: input, shape index: {}]
  %s6 = inlined_call_operand.vmem [shape: f32[32,1], index: 6, kind: input, shape index: {}]
  %s7 = inlined_call_operand.vmem [shape: f32[16,32], index: 7, kind: input, shape index: {}]
  %s8 = inlined_call_operand.vmem [shape: f32[16,1], index: 8, kind: input, shape index: {}]
  %s9 = inlined_call_operand.vmem [shape: f32[16,1], index: 9, kind: input, shape index: {}]
  %s10 = inlined_call_operand.<no memory space> [shape: f32[1,1], index: 10, kind: input, shape index: {}]
  %s11 = inlined_call_operand.hbm [shape: f32[1,512], index: 11, kind: output, shape index: {}]
  %s12 = sld [smem:[#allocation0]]
  $region77: #{tpu_custom_call.1} parent=0
    _
  %s14 = ssub.s32 1, %s12
  %s15 = scalar_select 0, %s14, %s12
  %v16 = vstv %s10
  %17 = vst [vmem:[#allocation2] sm:$0x1] %v16
  $region1: #{tpu_custom_call.1} parent=0
    #allocation3 [shape = 'u8[1024]{0}', space=vmem, size = 0x400, scoped, tag = 'output window, operand 0']
    #allocation4 [shape = 's32[2]{0}', space=sflag, size = 0x8, scoped, tag = 'scoped memory for tpu_custom_call.1']
    %18 = vsyncpa [#allocation4], 0
    %s19 = scalar_lea.sflag [#allocation4], 1
    %20 = vsyncpa %s19, 0
    loop: start=0, step=1, limit=6
    $region2: #{tpu_custom_call.1} parent=1 // loop_pre_header
      _
    $region3: #{tpu_custom_call.1} parent=1 // loop_header
      %s22 = sphi 0, %s26
      %p23 = scmp.ge.s32.totalorder %s22, 6
      %s32 = sphi 0, %s34
      %s35 = sphi 0, %s32
      %s36 = sphi 0, %s35
      %s52 = sphi 0, %s36
      %s56 = sphi 0, %s56
      %s58 = sphi 0, %s56
      %s59 = sphi 0, %s58
      %s73 = sphi 0, %s59
      %s77 = sphi 0, %s77
      %s79 = sphi 0, %s77
      %s80 = sphi 0, %s79
      %s94 = sphi 0, %s80
      %s98 = sphi 0, %s98
      %s100 = sphi 0, %s98
      %s101 = sphi 0, %s100
      %s115 = sphi 0, %s101
      %s119 = sphi 0, %s119
      %s121 = sphi 0, %s119
      %s122 = sphi 0, %s121
      %s136 = sphi 0, %s122
      %s140 = sphi 0, %s140
      %s142 = sphi 0, %s140
      %s143 = sphi 0, %s142
      %s157 = sphi 0, %s143
      %s161 = sphi 0, %s161
      %s163 = sphi 0, %s161
      %s164 = sphi 0, %s163
      %s178 = sphi 0, %s164
      %s182 = sphi 0, %s182
      %s184 = sphi 0, %s182
      %s185 = sphi 0, %s184
      %s199 = sphi 0, %s185
      %s203 = sphi 0, %s203
      %s205 = sphi 0, %s203
      %s206 = sphi 0, %s205
      %s220 = sphi 0, %s206
      %s224 = sphi 0, %s224
      %s226 = sphi 0, %s224
      %s227 = sphi 0, %s226
      %s241 = sphi 0, %s227
      %s245 = sphi 0, %s245
      %s247 = sphi 0, %s245
      %s248 = sphi 0, %s247
      %s262 = sphi 0, %s248
      %s268 = sphi 0, %s270
      %s271 = sphi 0, %s268
      %s272 = sphi 0, %s271
      %s288 = sphi 0, %s272
    $region4: #{tpu_custom_call.1} parent=1 // loop_header_branch
      %25 = sbr.rel (%p23) target = $region8
    $region5: #{tpu_custom_call.1} parent=1 // loop_body
      %s27 = ssub.s32 %s22, 1
      %s28 = ssub.s32 %s22, 2
      %s29 = sadd.s32 %s22, 1
      %s30 = ssub.s32 %s22, %s29
      %p31 = scmp.eq.s32.totalorder %s30, 0
      %s33 = sadd.s32 %s32, 1
      %s34 = scalar_select %p31, %s32, %s33
      %p37 = pneg %p31
      %p38 = scmp.eq.s32.totalorder %s22, 3
      %p39 = por %p37, %p38
      %p40 = scmp.ne.s32.totalorder %s32, %s35
      %p41 = scmp.eq.s32.totalorder %s22, 0
      %p42 = por %p40, %p41
      %p43 = scmp.ne.s32.totalorder %s32, %s35
      %p44 = scmp.eq.s32.totalorder %s27, 3
      %p45 = por %p43, %p44
      %p46 = scmp.ne.s32.totalorder %s35, %s36
      %p47 = scmp.eq.s32.totalorder %s27, 0
      %p48 = por %p46, %p47
      %p49 = scmp.ne.s32.totalorder %s35, %s36
      %p50 = scmp.eq.s32.totalorder %s28, 3
      %p51 = por %p49, %p50
      %p53 = scmp.ne.s32.totalorder %s36, %s52
      %p54 = scmp.eq.s32.totalorder %s28, 0
      %p55 = por %p53, %p54
      %s57 = sadd.s32 %s56, 1
      %p60 = scmp.eq.s32.totalorder %s22, 3
      %p61 = scmp.ne.s32.totalorder %s56, %s58
      %p62 = scmp.eq.s32.totalorder %s22, 0
      %p63 = por %p61, %p62
      %p64 = scmp.ne.s32.totalorder %s56, %s58
      %p65 = scmp.eq.s32.totalorder %s27, 3
      %p66 = por %p64, %p65
      %p67 = scmp.ne.s32.totalorder %s58, %s59
      %p68 = scmp.eq.s32.totalorder %s27, 0
      %p69 = por %p67, %p68
      %p70 = scmp.ne.s32.totalorder %s58, %s59
      %p71 = scmp.eq.s32.totalorder %s28, 3
      %p72 = por %p70, %p71
      %p74 = scmp.ne.s32.totalorder %s59, %s73
      %p75 = scmp.eq.s32.totalorder %s28, 0
      %p76 = por %p74, %p75
      %s78 = sadd.s32 %s77, 1
      %p81 = scmp.eq.s32.totalorder %s22, 3
      %p82 = scmp.ne.s32.totalorder %s77, %s79
      %p83 = scmp.eq.s32.totalorder %s22, 0
      %p84 = por %p82, %p83
      %p85 = scmp.ne.s32.totalorder %s77, %s79
      %p86 = scmp.eq.s32.totalorder %s27, 3
      %p87 = por %p85, %p86
      %p88 = scmp.ne.s32.totalorder %s79, %s80
      %p89 = scmp.eq.s32.totalorder %s27, 0
      %p90 = por %p88, %p89
      %p91 = scmp.ne.s32.totalorder %s79, %s80
      %p92 = scmp.eq.s32.totalorder %s28, 3
      %p93 = por %p91, %p92
      %p95 = scmp.ne.s32.totalorder %s80, %s94
      %p96 = scmp.eq.s32.totalorder %s28, 0
      %p97 = por %p95, %p96
      %s99 = sadd.s32 %s98, 1
      %p102 = scmp.eq.s32.totalorder %s22, 3
      %p103 = scmp.ne.s32.totalorder %s98, %s100
      %p104 = scmp.eq.s32.totalorder %s22, 0
      %p105 = por %p103, %p104
      %p106 = scmp.ne.s32.totalorder %s98, %s100
      %p107 = scmp.eq.s32.totalorder %s27, 3
      %p108 = por %p106, %p107
      %p109 = scmp.ne.s32.totalorder %s100, %s101
      %p110 = scmp.eq.s32.totalorder %s27, 0
      %p111 = por %p109, %p110
      %p112 = scmp.ne.s32.totalorder %s100, %s101
      %p113 = scmp.eq.s32.totalorder %s28, 3
      %p114 = por %p112, %p113
      %p116 = scmp.ne.s32.totalorder %s101, %s115
      %p117 = scmp.eq.s32.totalorder %s28, 0
      %p118 = por %p116, %p117
      %s120 = sadd.s32 %s119, 1
      %p123 = scmp.eq.s32.totalorder %s22, 3
      %p124 = scmp.ne.s32.totalorder %s119, %s121
      %p125 = scmp.eq.s32.totalorder %s22, 0
      %p126 = por %p124, %p125
      %p127 = scmp.ne.s32.totalorder %s119, %s121
      %p128 = scmp.eq.s32.totalorder %s27, 3
      %p129 = por %p127, %p128
      %p130 = scmp.ne.s32.totalorder %s121, %s122
      %p131 = scmp.eq.s32.totalorder %s27, 0
      %p132 = por %p130, %p131
      %p133 = scmp.ne.s32.totalorder %s121, %s122
      %p134 = scmp.eq.s32.totalorder %s28, 3
      %p135 = por %p133, %p134
      %p137 = scmp.ne.s32.totalorder %s122, %s136
      %p138 = scmp.eq.s32.totalorder %s28, 0
      %p139 = por %p137, %p138
      %s141 = sadd.s32 %s140, 1
      %p144 = scmp.eq.s32.totalorder %s22, 3
      %p145 = scmp.ne.s32.totalorder %s140, %s142
      %p146 = scmp.eq.s32.totalorder %s22, 0
      %p147 = por %p145, %p146
      %p148 = scmp.ne.s32.totalorder %s140, %s142
      %p149 = scmp.eq.s32.totalorder %s27, 3
      %p150 = por %p148, %p149
      %p151 = scmp.ne.s32.totalorder %s142, %s143
      %p152 = scmp.eq.s32.totalorder %s27, 0
      %p153 = por %p151, %p152
      %p154 = scmp.ne.s32.totalorder %s142, %s143
      %p155 = scmp.eq.s32.totalorder %s28, 3
      %p156 = por %p154, %p155
      %p158 = scmp.ne.s32.totalorder %s143, %s157
      %p159 = scmp.eq.s32.totalorder %s28, 0
      %p160 = por %p158, %p159
      %s162 = sadd.s32 %s161, 1
      %p165 = scmp.eq.s32.totalorder %s22, 3
      %p166 = scmp.ne.s32.totalorder %s161, %s163
      %p167 = scmp.eq.s32.totalorder %s22, 0
      %p168 = por %p166, %p167
      %p169 = scmp.ne.s32.totalorder %s161, %s163
      %p170 = scmp.eq.s32.totalorder %s27, 3
      %p171 = por %p169, %p170
      %p172 = scmp.ne.s32.totalorder %s163, %s164
      %p173 = scmp.eq.s32.totalorder %s27, 0
      %p174 = por %p172, %p173
      %p175 = scmp.ne.s32.totalorder %s163, %s164
      %p176 = scmp.eq.s32.totalorder %s28, 3
      %p177 = por %p175, %p176
      %p179 = scmp.ne.s32.totalorder %s164, %s178
      %p180 = scmp.eq.s32.totalorder %s28, 0
      %p181 = por %p179, %p180
      %s183 = sadd.s32 %s182, 1
      %p186 = scmp.eq.s32.totalorder %s22, 3
      %p187 = scmp.ne.s32.totalorder %s182, %s184
      %p188 = scmp.eq.s32.totalorder %s22, 0
      %p189 = por %p187, %p188
      %p190 = scmp.ne.s32.totalorder %s182, %s184
      %p191 = scmp.eq.s32.totalorder %s27, 3
      %p192 = por %p190, %p191
      %p193 = scmp.ne.s32.totalorder %s184, %s185
      %p194 = scmp.eq.s32.totalorder %s27, 0
      %p195 = por %p193, %p194
      %p196 = scmp.ne.s32.totalorder %s184, %s185
      %p197 = scmp.eq.s32.totalorder %s28, 3
      %p198 = por %p196, %p197
      %p200 = scmp.ne.s32.totalorder %s185, %s199
      %p201 = scmp.eq.s32.totalorder %s28, 0
      %p202 = por %p200, %p201
      %s204 = sadd.s32 %s203, 1
      %p207 = scmp.eq.s32.totalorder %s22, 3
      %p208 = scmp.ne.s32.totalorder %s203, %s205
      %p209 = scmp.eq.s32.totalorder %s22, 0
      %p210 = por %p208, %p209
      %p211 = scmp.ne.s32.totalorder %s203, %s205
      %p212 = scmp.eq.s32.totalorder %s27, 3
      %p213 = por %p211, %p212
      %p214 = scmp.ne.s32.totalorder %s205, %s206
      %p215 = scmp.eq.s32.totalorder %s27, 0
      %p216 = por %p214, %p215
      %p217 = scmp.ne.s32.totalorder %s205, %s206
      %p218 = scmp.eq.s32.totalorder %s28, 3
      %p219 = por %p217, %p218
      %p221 = scmp.ne.s32.totalorder %s206, %s220
      %p222 = scmp.eq.s32.totalorder %s28, 0
      %p223 = por %p221, %p222
      %s225 = sadd.s32 %s224, 1
      %p228 = scmp.eq.s32.totalorder %s22, 3
      %p229 = scmp.ne.s32.totalorder %s224, %s226
      %p230 = scmp.eq.s32.totalorder %s22, 0
      %p231 = por %p229, %p230
      %p232 = scmp.ne.s32.totalorder %s224, %s226
      %p233 = scmp.eq.s32.totalorder %s27, 3
      %p234 = por %p232, %p233
      %p235 = scmp.ne.s32.totalorder %s226, %s227
      %p236 = scmp.eq.s32.totalorder %s27, 0
      %p237 = por %p235, %p236
      %p238 = scmp.ne.s32.totalorder %s226, %s227
      %p239 = scmp.eq.s32.totalorder %s28, 3
      %p240 = por %p238, %p239
      %p242 = scmp.ne.s32.totalorder %s227, %s241
      %p243 = scmp.eq.s32.totalorder %s28, 0
      %p244 = por %p242, %p243
      %s246 = sadd.s32 %s245, 1
      %p249 = scmp.eq.s32.totalorder %s22, 3
      %p250 = scmp.ne.s32.totalorder %s245, %s247
      %p251 = scmp.eq.s32.totalorder %s22, 0
      %p252 = por %p250, %p251
      %p253 = scmp.ne.s32.totalorder %s245, %s247
      %p254 = scmp.eq.s32.totalorder %s27, 3
      %p255 = por %p253, %p254
      %p256 = scmp.ne.s32.totalorder %s247, %s248
      %p257 = scmp.eq.s32.totalorder %s27, 0
      %p258 = por %p256, %p257
      %p259 = scmp.ne.s32.totalorder %s247, %s248
      %p260 = scmp.eq.s32.totalorder %s28, 3
      %p261 = por %p259, %p260
      %p263 = scmp.ne.s32.totalorder %s248, %s262
      %p264 = scmp.eq.s32.totalorder %s28, 0
      %p265 = por %p263, %p264
      %s266 = ssub.s32 %s22, %s29
      %p267 = scmp.eq.s32.totalorder %s266, 0
      %s269 = sadd.s32 %s268, 1
      %s270 = scalar_select %p267, %s268, %s269
      %p273 = pneg %p267
      %p274 = scmp.eq.s32.totalorder %s22, 3
      %p275 = por %p273, %p274
      %p276 = scmp.ne.s32.totalorder %s268, %s271
      %p277 = scmp.eq.s32.totalorder %s22, 0
      %p278 = por %p276, %p277
      %p279 = scmp.ne.s32.totalorder %s268, %s271
      %p280 = scmp.eq.s32.totalorder %s27, 3
      %p281 = por %p279, %p280
      %p282 = scmp.ne.s32.totalorder %s271, %s272
      %p283 = scmp.eq.s32.totalorder %s27, 0
      %p284 = por %p282, %p283
      %p285 = scmp.ne.s32.totalorder %s271, %s272
      %p286 = scmp.eq.s32.totalorder %s28, 3
      %p287 = por %p285, %p286
      %p289 = scmp.ne.s32.totalorder %s272, %s288
      %p290 = scmp.eq.s32.totalorder %s28, 0
      %p291 = por %p289, %p290
      %p292 = scmp.le.s32.totalorder 1, %s22
      %p293 = scmp.lt.s32.totalorder %s22, 5
      %p294 = pnand %p292, %p293
      %p295 = pneg %p294
      // Predicated region
      $region9: #{tpu_custom_call.1} parent=5 // pred_check
        _
      $region10: #{tpu_custom_call.1} parent=5 // pred_check_branch
        %297 = sbr.rel (%p294) target = $region12
      $region11: #{tpu_custom_call.1} parent=5 // pred_region
        %s298 = ssub.s32 %s22, 1
        // Predicated region
        $region13: #{tpu_custom_call.1} parent=11 // pred_check
          %p299 = pneg %p69
        $region14: #{tpu_custom_call.1} parent=11 // pred_check_branch
          %301 = sbr.rel (%p299) target = $region16
        $region15: #{tpu_custom_call.1} parent=11 // pred_region
          _
        $region16: #{tpu_custom_call.1} parent=11 // pred_fallthru
          _
        // Predicated region
        $region17: #{tpu_custom_call.1} parent=11 // pred_check
          %p302 = pneg %p90
        $region18: #{tpu_custom_call.1} parent=11 // pred_check_branch
          %304 = sbr.rel (%p302) target = $region20
        $region19: #{tpu_custom_call.1} parent=11 // pred_region
          _
        $region20: #{tpu_custom_call.1} parent=11 // pred_fallthru
          _
        // Predicated region
        $region21: #{tpu_custom_call.1} parent=11 // pred_check
          %p305 = pneg %p111
        $region22: #{tpu_custom_call.1} parent=11 // pred_check_branch
          %307 = sbr.rel (%p305) target = $region24
        $region23: #{tpu_custom_call.1} parent=11 // pred_region
          _
        $region24: #{tpu_custom_call.1} parent=11 // pred_fallthru
          _
        // Predicated region
        $region25: #{tpu_custom_call.1} parent=11 // pred_check
          %p308 = pneg %p132
        $region26: #{tpu_custom_call.1} parent=11 // pred_check_branch
          %310 = sbr.rel (%p308) target = $region28
        $region27: #{tpu_custom_call.1} parent=11 // pred_region
          _
        $region28: #{tpu_custom_call.1} parent=11 // pred_fallthru
          _
        // Predicated region
        $region29: #{tpu_custom_call.1} parent=11 // pred_check
          %p311 = pneg %p153
        $region30: #{tpu_custom_call.1} parent=11 // pred_check_branch
          %313 = sbr.rel (%p311) target = $region32
        $region31: #{tpu_custom_call.1} parent=11 // pred_region
          _
        $region32: #{tpu_custom_call.1} parent=11 // pred_fallthru
          _
        // Predicated region
        $region33: #{tpu_custom_call.1} parent=11 // pred_check
          %p314 = pneg %p174
        $region34: #{tpu_custom_call.1} parent=11 // pred_check_branch
          %316 = sbr.rel (%p314) target = $region36
        $region35: #{tpu_custom_call.1} parent=11 // pred_region
          _
        $region36: #{tpu_custom_call.1} parent=11 // pred_fallthru
          _
        // Predicated region
        $region37: #{tpu_custom_call.1} parent=11 // pred_check
          %p317 = pneg %p195
        $region38: #{tpu_custom_call.1} parent=11 // pred_check_branch
          %319 = sbr.rel (%p317) target = $region40
        $region39: #{tpu_custom_call.1} parent=11 // pred_region
          _
        $region40: #{tpu_custom_call.1} parent=11 // pred_fallthru
          _
        // Predicated region
        $region41: #{tpu_custom_call.1} parent=11 // pred_check
          %p320 = pneg %p216
        $region42: #{tpu_custom_call.1} parent=11 // pred_check_branch
          %322 = sbr.rel (%p320) target = $region44
        $region43: #{tpu_custom_call.1} parent=11 // pred_region
          _
        $region44: #{tpu_custom_call.1} parent=11 // pred_fallthru
          _
        // Predicated region
        $region45: #{tpu_custom_call.1} parent=11 // pred_check
          %p323 = pneg %p237
        $region46: #{tpu_custom_call.1} parent=11 // pred_check_branch
          %325 = sbr.rel (%p323) target = $region48
        $region47: #{tpu_custom_call.1} parent=11 // pred_region
          _
        $region48: #{tpu_custom_call.1} parent=11 // pred_fallthru
          _
        // Predicated region
        $region49: #{tpu_custom_call.1} parent=11 // pred_check
          %p326 = pneg %p258
        $region50: #{tpu_custom_call.1} parent=11 // pred_check_branch
          %328 = sbr.rel (%p326) target = $region52
        $region51: #{tpu_custom_call.1} parent=11 // pred_region
          _
        $region52: #{tpu_custom_call.1} parent=11 // pred_fallthru
          _
      $region12: #{tpu_custom_call.1} parent=5 // pred_fallthru
        _
      %p329 = scmp.lt.s32.totalorder %s22, 4
      // Predicated region
      $region53: #{tpu_custom_call.1} parent=5 // pred_check
        %p330 = pneg %p329
      $region54: #{tpu_custom_call.1} parent=5 // pred_check_branch
        %332 = sbr.rel (%p330) target = $region56
      $region55: #{tpu_custom_call.1} parent=5 // pred_region
        // Predicated region
        $region57: #{tpu_custom_call.1} parent=55 // pred_check
          %p333 = pneg %p42
        $region58: #{tpu_custom_call.1} parent=55 // pred_check_branch
          %335 = sbr.rel (%p333) target = $region60
        $region59: #{tpu_custom_call.1} parent=55 // pred_region
          %s336 = smul.u32 16, %s22
          %p337 = scmp.lt.s32.totalorder %s336, 63
          %s338 = scalar_select %p337, %s336, 63
          %s339 = smul.addr %s338, 8
          %s340 = scalar_lea.vmem %s0, %s339
          %s341 = smul.u32 16, %s22
        $region60: #{tpu_custom_call.1} parent=55 // pred_fallthru
          _
      $region56: #{tpu_custom_call.1} parent=5 // pred_fallthru
        _
      %p342 = scmp.le.s32.totalorder 1, %s22
      %p343 = scmp.lt.s32.totalorder %s22, 5
      %p344 = pnand %p342, %p343
      %p345 = pneg %p344
      // Predicated region
      $region61: #{tpu_custom_call.1} parent=5 // pred_check
        _
      $region62: #{tpu_custom_call.1} parent=5 // pred_check_branch
        %347 = sbr.rel (%p344) target = $region64
      $region63: #{tpu_custom_call.1} parent=5 // pred_region
        %s348 = ssub.s32 %s22, 1
        %s349 = smul.u32 16, %s27
        %p350 = scmp.lt.s32.totalorder %s349, 63
        %s351 = scalar_select %p350, %s349, 63
        %s352 = smul.addr %s351, 8
        %s353 = scalar_lea.vmem %s0, %s352
        %p354 = pneg %p48
        %p355 = pneg %p45
        %p356 = pneg %p69
        %p357 = pneg %p66
        %p358 = pneg %p90
        %p359 = pneg %p87
        %p360 = pneg %p111
        %p361 = pneg %p108
        %p362 = pneg %p132
        %p363 = pneg %p129
        %p364 = pneg %p153
        %p365 = pneg %p150
        %p366 = pneg %p174
        %p367 = pneg %p171
        %p368 = pneg %p195
        %p369 = pneg %p192
        %p370 = pneg %p216
        %p371 = pneg %p213
        %p372 = pneg %p237
        %p373 = pneg %p234
        %p374 = pneg %p258
        %p375 = pneg %p255
        %p376 = pneg %p284
        %p377 = pneg %p281
        %s378 = sand.u32 %s271, 1
        %s379 = scalar_lea.sflag [#allocation4], %s378
        %s380 = sand.u32 %s271, 1
        %s381 = scalar_lea.vmem [#allocation3], %s380
        %s382 = smul.u32 16, %s27
        %p383 = scmp.lt.s32.totalorder %s382, 63
        %s384 = scalar_select %p383, %s382, 63
        %s385 = smul.addr %s384, 8
        %s386 = scalar_lea.vmem %s0, %s385
        %s387 = smul.u32 16, %s27
        %v388 = vld [vmem:[%s386] sm:$0xff]
        %v389 = vld [vmem:[%s386 + $0x8] sm:$0xff]
        %v390 = vld [vmem:[%s386 + $0x10] sm:$0xff]
        %v391 = vld [vmem:[%s386 + $0x18] sm:$0xff]
        %v392 = vld [vmem:[%s386 + $0x20] sm:$0xff]
        %v393 = vld [vmem:[%s386 + $0x28] sm:$0xff]
        %v394 = vld [vmem:[%s386 + $0x30] sm:$0xff]
        %v395 = vld [vmem:[%s386 + $0x38] sm:$0xff]
        %v396 = vld [vmem:[%s386 + $0x40] sm:$0xff]
        %v397 = vld [vmem:[%s386 + $0x48] sm:$0xff]
        %v398 = vld [vmem:[%s386 + $0x50] sm:$0xff]
        %v399 = vld [vmem:[%s386 + $0x58] sm:$0xff]
        %v400 = vld [vmem:[%s386 + $0x60] sm:$0xff]
        %v401 = vld [vmem:[%s386 + $0x68] sm:$0xff]
        %v402 = vld [vmem:[%s386 + $0x70] sm:$0xff]
        %v403 = vld [vmem:[%s386 + $0x78] sm:$0xff]
        %404 = vxpose.xlu0.b32.start [1/16] %v388, 128
        %405 = vxpose.xlu0.b32.cont [2/16] %v389, 128
        %406 = vxpose.xlu0.b32.cont [3/16] %v390, 128
        %407 = vxpose.xlu0.b32.cont [4/16] %v391, 128
        %408 = vxpose.xlu0.b32.cont [5/16] %v392, 128
        %409 = vxpose.xlu0.b32.cont [6/16] %v393, 128
        %410 = vxpose.xlu0.b32.cont [7/16] %v394, 128
        %411 = vxpose.xlu0.b32.cont [8/16] %v395, 128
        %412 = vxpose.xlu0.b32.cont [9/16] %v396, 128
        %413 = vxpose.xlu0.b32.cont [10/16] %v397, 128
        %414 = vxpose.xlu0.b32.cont [11/16] %v398, 128
        %415 = vxpose.xlu0.b32.cont [12/16] %v399, 128
        %416 = vxpose.xlu0.b32.cont [13/16] %v400, 128
        %417 = vxpose.xlu0.b32.cont [14/16] %v401, 128
        %418 = vxpose.xlu0.b32.cont [15/16] %v402, 128
        %419 = vxpose.xlu0.b32.end [16/16] %v403, 128
        %v420 = vpop.trf.xlu0
        %v421 = vpop.trf.xlu0
        %v422 = vpop.trf.xlu0
        %v423 = vpop.trf.xlu0
        %v424 = vpop.trf.xlu0
        %v425 = vpop.trf.xlu0
        %v426 = vpop.trf.xlu0
        %v427 = vpop.trf.xlu0
        %v428 = vpop.trf.xlu0
        %v429 = vpop.trf.xlu0
        %v430 = vpop.trf.xlu0
        %v431 = vpop.trf.xlu0
        %v432 = vpop.trf.xlu0
        %v433 = vpop.trf.xlu0
        %v434 = vpop.trf.xlu0
        %v435 = vpop.trf.xlu0
        %v436 = vld [vmem:[%s1] sm:$0xff]
        %v437 = vld [vmem:[%s1 + $0x8] sm:$0xff]
        %v438 = vld [vmem:[%s1 + $0x10] sm:$0xff]
        %v439 = vld [vmem:[%s1 + $0x18] sm:$0xff]
        %v440 = vld [vmem:[%s2] sm:$0xff]
        %v441 = vld [vmem:[%s2 + $0x8] sm:$0xff]
        %v442 = vld [vmem:[%s2 + $0x10] sm:$0xff]
        %v443 = vld [vmem:[%s2 + $0x18] sm:$0xff]
        %445 = vset.pattern.permute.xlu0 0
        %446 = vperm.xlu0 %445, %v440
        %v447 = vpop.permute.xlu0 %446
        %450 = vset.pattern.permute.xlu0 0
        %451 = vperm.xlu0 %450, %v441
        %v452 = vpop.permute.xlu0 %451
        %455 = vset.pattern.permute.xlu0 0
        %456 = vperm.xlu0 %455, %v442
        %v457 = vpop.permute.xlu0 %456
        %460 = vset.pattern.permute.xlu0 0
        %461 = vperm.xlu0 %460, %v443
        %v462 = vpop.permute.xlu0 %461
        %vm464 = vcmask 130048
        %v466 = vsel %vm464, %v436, 0
        %v469 = vsel %vm464, %v437, 0
        %v472 = vsel %vm464, %v438, 0
        %v475 = vsel %vm464, %v439, 0
        %477 = vmatprep.subr.mxu0 0.0
        %478 = vmatpush1.msra.mxu0 %v420
        %479 = vmatprep.subr.mxu0 0.0
        %480 = vmatpush1.msra.mxu0 %v421
        %481 = vmatprep.subr.mxu0 0.0
        %482 = vmatpush1.msra.mxu0 0.0
        %483 = vmatprep.subr.mxu0 0.0
        %484 = vmatpush1.msra.mxu0 0.0
        %485 = vmatprep.subr.mxu0 0.0
        %486 = vmatpush1.msra.mxu0 0.0
        %487 = vmatprep.subr.mxu0 0.0
        %488 = vmatpush1.msra.mxu0 0.0
        %489 = vmatprep.subr.mxu0 0.0
        %490 = vmatpush1.msra.mxu0 0.0
        %491 = vmatprep.subr.mxu0 0.0
        %492 = vmatpush1.msra.mxu0 0.0
        %493 = vmatprep.subr.mxu0 0.0
        %494 = vmatpush1.msra.mxu0 0.0
        %495 = vmatprep.subr.mxu0 0.0
        %496 = vmatpush1.msra.mxu0 0.0
        %497 = vmatprep.subr.mxu0 0.0
        %498 = vmatpush1.msra.mxu0 0.0
        %499 = vmatprep.subr.mxu0 0.0
        %500 = vmatpush1.msra.mxu0 0.0
        %501 = vmatprep.subr.mxu0 0.0
        %502 = vmatpush1.msra.mxu0 0.0
        %503 = vmatprep.subr.mxu0 0.0
        %504 = vmatpush1.msra.mxu0 0.0
        %505 = vmatprep.subr.mxu0 0.0
        %506 = vmatpush1.msra.mxu0 0.0
        %507 = vmatprep.subr.mxu0 0.0
        %508 = vmatpush1.msra.mxu0 0.0
        %509 = vmatprep.subr.mxu0 0.0
        %510 = vmatpush1.msra.mxu0 0.0
        %511 = vmatprep.subr.mxu0 0.0
        %512 = vmatpush1.msra.mxu0 0.0
        %513 = vmatprep.subr.mxu0 0.0
        %514 = vmatpush1.msra.mxu0 0.0
        %515 = vmatprep.subr.mxu0 0.0
        %516 = vmatpush1.msra.mxu0 0.0
        %517 = vmatprep.subr.mxu0 0.0
        %518 = vmatpush1.msra.mxu0 0.0
        %519 = vmatprep.subr.mxu0 0.0
        %520 = vmatpush1.msra.mxu0 0.0
        %521 = vmatprep.subr.mxu0 0.0
        %522 = vmatpush1.msra.mxu0 0.0
        %523 = vmatprep.subr.mxu0 0.0
        %524 = vmatpush1.msra.mxu0 0.0
        %525 = vmatprep.subr.mxu0 0.0
        %526 = vmatpush1.msra.mxu0 0.0
        %527 = vmatprep.subr.mxu0 0.0
        %528 = vmatpush1.msra.mxu0 0.0
        %529 = vmatprep.subr.mxu0 0.0
        %530 = vmatpush1.msra.mxu0 0.0
        %531 = vmatprep.subr.mxu0 0.0
        %532 = vmatpush1.msra.mxu0 0.0
        %533 = vmatprep.subr.mxu0 0.0
        %534 = vmatpush1.msra.mxu0 0.0
        %535 = vmatprep.subr.mxu0 0.0
        %536 = vmatpush1.msra.mxu0 0.0
        %537 = vmatprep.subr.mxu0 0.0
        %538 = vmatpush1.msra.mxu0 0.0
        %539 = vmatprep.subr.mxu0 0.0
        %540 = vmatpush1.msra.mxu0 0.0
        %541 = vmatprep.mubr.f32.mxu0 0.0
        %542 = vmatmul.mubr.f32.gmra.mrb[0].mxu0 %v466
        %v543 = vpop.f32.mrb[0].mxu0
        %v544 = vadd.f32 %v447, %v543
        %v545 = vpop.f32.mrb[0].mxu0
        %546 = vmatprep.mubr.f32.mxu0 0.0
        %547 = vmatmul.mubr.f32.gmra.mrb[0].mxu0 %v469
        %v548 = vpop.f32.mrb[0].mxu0
        %v549 = vadd.f32 %v452, %v548
        %v550 = vpop.f32.mrb[0].mxu0
        %551 = vmatprep.mubr.f32.mxu0 0.0
        %552 = vmatmul.mubr.f32.gmra.mrb[0].mxu0 %v472
        %v553 = vpop.f32.mrb[0].mxu0
        %v554 = vadd.f32 %v457, %v553
        %v555 = vpop.f32.mrb[0].mxu0
        %556 = vmatprep.mubr.f32.mxu0 0.0
        %557 = vmatmul.mubr.f32.gmra.mrb[0].mxu0 %v475
        %v558 = vpop.f32.mrb[0].mxu0
        %v559 = vadd.f32 %v462, %v558
        %v560 = vpop.f32.mrb[0].mxu0
        %561 = vdwg.mxu0
        %v562 = vmax.f32 %v544, 0.0
        %v563 = vmax.f32 %v549, 0.0
        %v564 = vmax.f32 %v554, 0.0
        %v565 = vmax.f32 %v559, 0.0
        %v566 = vld [vmem:[%s3] sm:$0xff]
        %v567 = vld [vmem:[%s3 + $0x8] sm:$0xff]
        %v568 = vld [vmem:[%s3 + $0x10] sm:$0xff]
        %v569 = vld [vmem:[%s3 + $0x18] sm:$0xff]
        %v570 = vld [vmem:[%s4] sm:$0xff]
        %v571 = vld [vmem:[%s4 + $0x8] sm:$0xff]
        %v572 = vld [vmem:[%s4 + $0x10] sm:$0xff]
        %v573 = vld [vmem:[%s4 + $0x18] sm:$0xff]
        %575 = vset.pattern.permute.xlu0 0
        %576 = vperm.xlu0 %575, %v570
        %v577 = vpop.permute.xlu0 %576
        %580 = vset.pattern.permute.xlu0 0
        %581 = vperm.xlu0 %580, %v571
        %v582 = vpop.permute.xlu0 %581
        %585 = vset.pattern.permute.xlu0 0
        %586 = vperm.xlu0 %585, %v572
        %v587 = vpop.permute.xlu0 %586
        %590 = vset.pattern.permute.xlu0 0
        %591 = vperm.xlu0 %590, %v573
        %v592 = vpop.permute.xlu0 %591
        %vm594 = vcmask 261120
        %v596 = vsel %vm594, %v566, 0
        %v599 = vsel %vm594, %v567, 0
        %v602 = vsel %vm594, %v568, 0
        %v605 = vsel %vm594, %v569, 0
        %607 = vmatprep.subr.mxu0 0.0
        %608 = vmatpush1.msra.mxu0 %v562
        %609 = vmatprep.subr.mxu0 0.0
        %610 = vmatpush1.msra.mxu0 %v563
        %611 = vmatprep.subr.mxu0 0.0
        %612 = vmatpush1.msra.mxu0 %v564
        %613 = vmatprep.subr.mxu0 0.0
        %614 = vmatpush1.msra.mxu0 %v565
        %615 = vmatprep.subr.mxu0 0.0
        %616 = vmatpush1.msra.mxu0 0.0
        %617 = vmatprep.subr.mxu0 0.0
        %618 = vmatpush1.msra.mxu0 0.0
        %619 = vmatprep.subr.mxu0 0.0
        %620 = vmatpush1.msra.mxu0 0.0
        %621 = vmatprep.subr.mxu0 0.0
        %622 = vmatpush1.msra.mxu0 0.0
        %623 = vmatprep.subr.mxu0 0.0
        %624 = vmatpush1.msra.mxu0 0.0
        %625 = vmatprep.subr.mxu0 0.0
        %626 = vmatpush1.msra.mxu0 0.0
        %627 = vmatprep.subr.mxu0 0.0
        %628 = vmatpush1.msra.mxu0 0.0
        %629 = vmatprep.subr.mxu0 0.0
        %630 = vmatpush1.msra.mxu0 0.0
        %631 = vmatprep.subr.mxu0 0.0
        %632 = vmatpush1.msra.mxu0 0.0
        %633 = vmatprep.subr.mxu0 0.0
        %634 = vmatpush1.msra.mxu0 0.0
        %635 = vmatprep.subr.mxu0 0.0
        %636 = vmatpush1.msra.mxu0 0.0
        %637 = vmatprep.subr.mxu0 0.0
        %638 = vmatpush1.msra.mxu0 0.0
        %639 = vmatprep.subr.mxu0 0.0
        %640 = vmatpush1.msra.mxu0 0.0
        %641 = vmatprep.subr.mxu0 0.0
        %642 = vmatpush1.msra.mxu0 0.0
        %643 = vmatprep.subr.mxu0 0.0
        %644 = vmatpush1.msra.mxu0 0.0
        %645 = vmatprep.subr.mxu0 0.0
        %646 = vmatpush1.msra.mxu0 0.0
        %647 = vmatprep.subr.mxu0 0.0
        %648 = vmatpush1.msra.mxu0 0.0
        %649 = vmatprep.subr.mxu0 0.0
        %650 = vmatpush1.msra.mxu0 0.0
        %651 = vmatprep.subr.mxu0 0.0
        %652 = vmatpush1.msra.mxu0 0.0
        %653 = vmatprep.subr.mxu0 0.0
        %654 = vmatpush1.msra.mxu0 0.0
        %655 = vmatprep.subr.mxu0 0.0
        %656 = vmatpush1.msra.mxu0 0.0
        %657 = vmatprep.subr.mxu0 0.0
        %658 = vmatpush1.msra.mxu0 0.0
        %659 = vmatprep.subr.mxu0 0.0
        %660 = vmatpush1.msra.mxu0 0.0
        %661 = vmatprep.subr.mxu0 0.0
        %662 = vmatpush1.msra.mxu0 0.0
        %663 = vmatprep.subr.mxu0 0.0
        %664 = vmatpush1.msra.mxu0 0.0
        %665 = vmatprep.subr.mxu0 0.0
        %666 = vmatpush1.msra.mxu0 0.0
        %667 = vmatprep.subr.mxu0 0.0
        %668 = vmatpush1.msra.mxu0 0.0
        %669 = vmatprep.subr.mxu0 0.0
        %670 = vmatpush1.msra.mxu0 0.0
        %671 = vmatprep.mubr.f32.mxu0 0.0
        %672 = vmatmul.mubr.f32.gmra.mrb[0].mxu0 %v596
        %v673 = vpop.f32.mrb[0].mxu0
        %v674 = vadd.f32 %v577, %v673
        %v675 = vpop.f32.mrb[0].mxu0
        %676 = vmatprep.mubr.f32.mxu0 0.0
        %677 = vmatmul.mubr.f32.gmra.mrb[0].mxu0 %v599
        %v678 = vpop.f32.mrb[0].mxu0
        %v679 = vadd.f32 %v582, %v678
        %v680 = vpop.f32.mrb[0].mxu0
        %681 = vmatprep.mubr.f32.mxu0 0.0
        %682 = vmatmul.mubr.f32.gmra.mrb[0].mxu0 %v602
        %v683 = vpop.f32.mrb[0].mxu0
        %v684 = vadd.f32 %v587, %v683
        %v685 = vpop.f32.mrb[0].mxu0
        %686 = vmatprep.mubr.f32.mxu0 0.0
        %687 = vmatmul.mubr.f32.gmra.mrb[0].mxu0 %v605
        %v688 = vpop.f32.mrb[0].mxu0
        %v689 = vadd.f32 %v592, %v688
        %v690 = vpop.f32.mrb[0].mxu0
        %691 = vdwg.mxu0
        %v692 = vmax.f32 %v674, 0.0
        %v693 = vmax.f32 %v679, 0.0
        %v694 = vmax.f32 %v684, 0.0
        %v695 = vmax.f32 %v689, 0.0
        %v696 = vld [vmem:[%s5] sm:$0xff]
        %v697 = vld [vmem:[%s5 + $0x8] sm:$0xff]
        %v698 = vld [vmem:[%s5 + $0x10] sm:$0xff]
        %v699 = vld [vmem:[%s5 + $0x18] sm:$0xff]
        %v700 = vld [vmem:[%s6] sm:$0xff]
        %v701 = vld [vmem:[%s6 + $0x8] sm:$0xff]
        %v702 = vld [vmem:[%s6 + $0x10] sm:$0xff]
        %v703 = vld [vmem:[%s6 + $0x18] sm:$0xff]
        %705 = vset.pattern.permute.xlu0 0
        %706 = vperm.xlu0 %705, %v700
        %v707 = vpop.permute.xlu0 %706
        %710 = vset.pattern.permute.xlu0 0
        %711 = vperm.xlu0 %710, %v701
        %v712 = vpop.permute.xlu0 %711
        %715 = vset.pattern.permute.xlu0 0
        %716 = vperm.xlu0 %715, %v702
        %v717 = vpop.permute.xlu0 %716
        %720 = vset.pattern.permute.xlu0 0
        %721 = vperm.xlu0 %720, %v703
        %v722 = vpop.permute.xlu0 %721
        %v725 = vsel %vm594, %v696, 0
        %v728 = vsel %vm594, %v697, 0
        %v731 = vsel %vm594, %v698, 0
        %v734 = vsel %vm594, %v699, 0
        %736 = vmatprep.subr.mxu0 0.0
        %737 = vmatpush1.msra.mxu0 %v692
        %738 = vmatprep.subr.mxu0 0.0
        %739 = vmatpush1.msra.mxu0 %v693
        %740 = vmatprep.subr.mxu0 0.0
        %741 = vmatpush1.msra.mxu0 %v694
        %742 = vmatprep.subr.mxu0 0.0
        %743 = vmatpush1.msra.mxu0 %v695
        %744 = vmatprep.subr.mxu0 0.0
        %745 = vmatpush1.msra.mxu0 0.0
        %746 = vmatprep.subr.mxu0 0.0
        %747 = vmatpush1.msra.mxu0 0.0
        %748 = vmatprep.subr.mxu0 0.0
        %749 = vmatpush1.msra.mxu0 0.0
        %750 = vmatprep.subr.mxu0 0.0
        %751 = vmatpush1.msra.mxu0 0.0
        %752 = vmatprep.subr.mxu0 0.0
        %753 = vmatpush1.msra.mxu0 0.0
        %754 = vmatprep.subr.mxu0 0.0
        %755 = vmatpush1.msra.mxu0 0.0
        %756 = vmatprep.subr.mxu0 0.0
        %757 = vmatpush1.msra.mxu0 0.0
        %758 = vmatprep.subr.mxu0 0.0
        %759 = vmatpush1.msra.mxu0 0.0
        %760 = vmatprep.subr.mxu0 0.0
        %761 = vmatpush1.msra.mxu0 0.0
        %762 = vmatprep.subr.mxu0 0.0
        %763 = vmatpush1.msra.mxu0 0.0
        %764 = vmatprep.subr.mxu0 0.0
        %765 = vmatpush1.msra.mxu0 0.0
        %766 = vmatprep.subr.mxu0 0.0
        %767 = vmatpush1.msra.mxu0 0.0
        %768 = vmatprep.subr.mxu0 0.0
        %769 = vmatpush1.msra.mxu0 0.0
        %770 = vmatprep.subr.mxu0 0.0
        %771 = vmatpush1.msra.mxu0 0.0
        %772 = vmatprep.subr.mxu0 0.0
        %773 = vmatpush1.msra.mxu0 0.0
        %774 = vmatprep.subr.mxu0 0.0
        %775 = vmatpush1.msra.mxu0 0.0
        %776 = vmatprep.subr.mxu0 0.0
        %777 = vmatpush1.msra.mxu0 0.0
        %778 = vmatprep.subr.mxu0 0.0
        %779 = vmatpush1.msra.mxu0 0.0
        %780 = vmatprep.subr.mxu0 0.0
        %781 = vmatpush1.msra.mxu0 0.0
        %782 = vmatprep.subr.mxu0 0.0
        %783 = vmatpush1.msra.mxu0 0.0
        %784 = vmatprep.subr.mxu0 0.0
        %785 = vmatpush1.msra.mxu0 0.0
        %786 = vmatprep.subr.mxu0 0.0
        %787 = vmatpush1.msra.mxu0 0.0
        %788 = vmatprep.subr.mxu0 0.0
        %789 = vmatpush1.msra.mxu0 0.0
        %790 = vmatprep.subr.mxu0 0.0
        %791 = vmatpush1.msra.mxu0 0.0
        %792 = vmatprep.subr.mxu0 0.0
        %793 = vmatpush1.msra.mxu0 0.0
        %794 = vmatprep.subr.mxu0 0.0
        %795 = vmatpush1.msra.mxu0 0.0
        %796 = vmatprep.subr.mxu0 0.0
        %797 = vmatpush1.msra.mxu0 0.0
        %798 = vmatprep.subr.mxu0 0.0
        %799 = vmatpush1.msra.mxu0 0.0
        %800 = vmatprep.mubr.f32.mxu0 0.0
        %801 = vmatmul.mubr.f32.gmra.mrb[0].mxu0 %v725
        %v802 = vpop.f32.mrb[0].mxu0
        %v803 = vadd.f32 %v707, %v802
        %v804 = vpop.f32.mrb[0].mxu0
        %805 = vmatprep.mubr.f32.mxu0 0.0
        %806 = vmatmul.mubr.f32.gmra.mrb[0].mxu0 %v728
        %v807 = vpop.f32.mrb[0].mxu0
        %v808 = vadd.f32 %v712, %v807
        %v809 = vpop.f32.mrb[0].mxu0
        %810 = vmatprep.mubr.f32.mxu0 0.0
        %811 = vmatmul.mubr.f32.gmra.mrb[0].mxu0 %v731
        %v812 = vpop.f32.mrb[0].mxu0
        %v813 = vadd.f32 %v717, %v812
        %v814 = vpop.f32.mrb[0].mxu0
        %815 = vmatprep.mubr.f32.mxu0 0.0
        %816 = vmatmul.mubr.f32.gmra.mrb[0].mxu0 %v734
        %v817 = vpop.f32.mrb[0].mxu0
        %v818 = vadd.f32 %v722, %v817
        %v819 = vpop.f32.mrb[0].mxu0
        %820 = vdwg.mxu0
        %v821 = vmax.f32 %v803, 0.0
        %v822 = vmax.f32 %v808, 0.0
        %v823 = vmax.f32 %v813, 0.0
        %v824 = vmax.f32 %v818, 0.0
        %v825 = vld [vmem:[%s7] sm:$0xff]
        %v826 = vld [vmem:[%s7 + $0x8] sm:$0xff]
        %v827 = vld [vmem:[%s8] sm:$0xff]
        %v828 = vld [vmem:[%s8 + $0x8] sm:$0xff]
        %830 = vset.pattern.permute.xlu0 0
        %831 = vperm.xlu0 %830, %v827
        %v832 = vpop.permute.xlu0 %831
        %835 = vset.pattern.permute.xlu0 0
        %836 = vperm.xlu0 %835, %v828
        %v837 = vpop.permute.xlu0 %836
        %v840 = vsel %vm594, %v825, 0
        %v843 = vsel %vm594, %v826, 0
        %845 = vmatprep.subr.mxu0 0.0
        %846 = vmatpush1.msra.mxu0 %v821
        %847 = vmatprep.subr.mxu0 0.0
        %848 = vmatpush1.msra.mxu0 %v822
        %849 = vmatprep.subr.mxu0 0.0
        %850 = vmatpush1.msra.mxu0 %v823
        %851 = vmatprep.subr.mxu0 0.0
        %852 = vmatpush1.msra.mxu0 %v824
        %853 = vmatprep.subr.mxu0 0.0
        %854 = vmatpush1.msra.mxu0 0.0
        %855 = vmatprep.subr.mxu0 0.0
        %856 = vmatpush1.msra.mxu0 0.0
        %857 = vmatprep.subr.mxu0 0.0
        %858 = vmatpush1.msra.mxu0 0.0
        %859 = vmatprep.subr.mxu0 0.0
        %860 = vmatpush1.msra.mxu0 0.0
        %861 = vmatprep.subr.mxu0 0.0
        %862 = vmatpush1.msra.mxu0 0.0
        %863 = vmatprep.subr.mxu0 0.0
        %864 = vmatpush1.msra.mxu0 0.0
        %865 = vmatprep.subr.mxu0 0.0
        %866 = vmatpush1.msra.mxu0 0.0
        %867 = vmatprep.subr.mxu0 0.0
        %868 = vmatpush1.msra.mxu0 0.0
        %869 = vmatprep.subr.mxu0 0.0
        %870 = vmatpush1.msra.mxu0 0.0
        %871 = vmatprep.subr.mxu0 0.0
        %872 = vmatpush1.msra.mxu0 0.0
        %873 = vmatprep.subr.mxu0 0.0
        %874 = vmatpush1.msra.mxu0 0.0
        %875 = vmatprep.subr.mxu0 0.0
        %876 = vmatpush1.msra.mxu0 0.0
        %877 = vmatprep.subr.mxu0 0.0
        %878 = vmatpush1.msra.mxu0 0.0
        %879 = vmatprep.subr.mxu0 0.0
        %880 = vmatpush1.msra.mxu0 0.0
        %881 = vmatprep.subr.mxu0 0.0
        %882 = vmatpush1.msra.mxu0 0.0
        %883 = vmatprep.subr.mxu0 0.0
        %884 = vmatpush1.msra.mxu0 0.0
        %885 = vmatprep.subr.mxu0 0.0
        %886 = vmatpush1.msra.mxu0 0.0
        %887 = vmatprep.subr.mxu0 0.0
        %888 = vmatpush1.msra.mxu0 0.0
        %889 = vmatprep.subr.mxu0 0.0
        %890 = vmatpush1.msra.mxu0 0.0
        %891 = vmatprep.subr.mxu0 0.0
        %892 = vmatpush1.msra.mxu0 0.0
        %893 = vmatprep.subr.mxu0 0.0
        %894 = vmatpush1.msra.mxu0 0.0
        %895 = vmatprep.subr.mxu0 0.0
        %896 = vmatpush1.msra.mxu0 0.0
        %897 = vmatprep.subr.mxu0 0.0
        %898 = vmatpush1.msra.mxu0 0.0
        %899 = vmatprep.subr.mxu0 0.0
        %900 = vmatpush1.msra.mxu0 0.0
        %901 = vmatprep.subr.mxu0 0.0
        %902 = vmatpush1.msra.mxu0 0.0
        %903 = vmatprep.subr.mxu0 0.0
        %904 = vmatpush1.msra.mxu0 0.0
        %905 = vmatprep.subr.mxu0 0.0
        %906 = vmatpush1.msra.mxu0 0.0
        %907 = vmatprep.subr.mxu0 0.0
        %908 = vmatpush1.msra.mxu0 0.0
        %909 = vmatprep.mubr.f32.mxu0 0.0
        %910 = vmatmul.mubr.f32.gmra.mrb[0].mxu0 %v840
        %v911 = vpop.f32.mrb[0].mxu0
        %v912 = vadd.f32 %v832, %v911
        %v913 = vpop.f32.mrb[0].mxu0
        %914 = vmatprep.mubr.f32.mxu0 0.0
        %915 = vmatmul.mubr.f32.gmra.mrb[0].mxu0 %v843
        %v916 = vpop.f32.mrb[0].mxu0
        %v917 = vadd.f32 %v837, %v916
        %v918 = vpop.f32.mrb[0].mxu0
        %919 = vdwg.mxu0
        %v920 = vxor.u32 %v912, 2147483648
        %v921 = vxor.u32 %v917, 2147483648
        %v922 = vmul.f32 %v920, 1.442695
        %v923 = vpow.pop %v922
        %v924 = vmul.f32 %v921, 1.442695
        %v925 = vpow.pop %v924
        %v926 = vadd.f32 %v923, 1.0
        %v927 = vadd.f32 %v925, 1.0
        %v928 = vrcp.pop %v926
        %v929 = vmul.f32 1.0, %v928
        %v930 = vrcp.pop %v927
        %v931 = vmul.f32 1.0, %v930
        %v932 = vmul.f32 %v929, %v420
        %v933 = vmul.f32 %v931, %v421
        %v934 = vld [vmem:[%s9] sm:$0xff]
        %v935 = vld [vmem:[%s9 + $0x8] sm:$0xff]
        %937 = vset.pattern.permute.xlu0 0
        %938 = vperm.xlu0 %937, %v934
        %v939 = vpop.permute.xlu0 %938
        %942 = vset.pattern.permute.xlu0 0
        %943 = vperm.xlu0 %942, %v935
        %v944 = vpop.permute.xlu0 %943
        %v946 = vmul.f32 %v932, %v939
        %v947 = vmul.f32 %v933, %v944
        %v948 = vadd.f32 %v946, %v947
        %v949 = vrot.slane %v948, 4
        %v950 = vadd.f32 %v948, %v949
        %v951 = vrot.slane %v950, 2
        %v952 = vadd.f32 %v950, %v951
        %v953 = vrot.slane %v952, 1
        %v954 = vadd.f32 %v952, %v953
        %v955 = vld [vmem:[#allocation2] sm:$0x1]
        %957 = vset.pattern.permute.xlu0 0
        %958 = vperm.xlu0 %957, %v955
        %v959 = vpop.permute.xlu0 %958
        %v961 = vlaneseq
        %v962 = vshrl.u32 %v961, 7
        %v963 = vsub.s32 0, %v962
        %v964 = vrot.slane %v959, %v963
        %v965 = vadd.f32 %v954, %v964
        %966 = vst [vmem:[%s381] sm:$0x1] %v965
        %s967 = sand.u32 %s271, 1
        %s968 = scalar_lea.sflag [#allocation4], %s967
        %s969 = sand.u32 %s271, 1
        %s970 = scalar_lea.vmem [#allocation3], %s969
        // Predicated region
        $region65: #{tpu_custom_call.1} parent=63 // pred_check
          %p971 = pneg %p281
        $region66: #{tpu_custom_call.1} parent=63 // pred_check_branch
          %973 = sbr.rel (%p971) target = $region68
        $region67: #{tpu_custom_call.1} parent=63 // pred_region
          %s975 = ssub.s32 16, 16
          %976 = vsyncadd %s968, %s975
          %s977 = smul.addr %s27, 16
          %s978 = scalar_lea.hbm %s11, %s977
          %s980 = sshll.u32 %s970, 4
          %s981 = int_to_ptr.vmem [resolvable:$true] %s980
          %983 = dma.vmem_to_hbm [thread:$0]  %s981, 16, %s978, %s968
        $region68: #{tpu_custom_call.1} parent=63 // pred_fallthru
          _
      $region64: #{tpu_custom_call.1} parent=5 // pred_fallthru
        _
      %p984 = scmp.le.s32.totalorder 2, %s22
      // Predicated region
      $region69: #{tpu_custom_call.1} parent=5 // pred_check
        %p985 = pneg %p984
      $region70: #{tpu_custom_call.1} parent=5 // pred_check_branch
        %987 = sbr.rel (%p985) target = $region72
      $region71: #{tpu_custom_call.1} parent=5 // pred_region
        %s988 = ssub.s32 %s22, 2
        // Predicated region
        $region73: #{tpu_custom_call.1} parent=71 // pred_check
          %p989 = pneg %p287
        $region74: #{tpu_custom_call.1} parent=71 // pred_check_branch
          %991 = sbr.rel (%p989) target = $region76
        $region75: #{tpu_custom_call.1} parent=71 // pred_region
          %s992 = sand.u32 %s272, 1
          %s993 = scalar_lea.sflag [#allocation4], %s992
          %s994 = sand.u32 %s272, 1
          %s995 = scalar_lea.vmem [#allocation3], %s994
          %996 = dma.done %s993, 16
        $region76: #{tpu_custom_call.1} parent=71 // pred_fallthru
          _
      $region72: #{tpu_custom_call.1} parent=5 // pred_fallthru
        _
    $region6: #{tpu_custom_call.1} parent=1 // loop_footer
      %s26 = sadd.s32 1, %s22
    $region7: #{tpu_custom_call.1} parent=1 // loop_footer_branch
      %21 = sbr.rel target = $region3
    $region8: #{tpu_custom_call.1} parent=1 // loop_exit
      _
    %997 = vsyncpa [#allocation4], 1
    %s998 = scalar_lea.sflag [#allocation4], 1
    %999 = vsyncpa %s998, 1

</llo_original>
